<compile_context>
chip_gen: v5e
topology: v5e:2x2
jax: 0.10.0
libtpu: 0.0.40
codegen_flags: <defaults>
</compile_context>

<pallas_src>
import functools

import jax
import jax.numpy as jnp
from jax import lax
from jax.experimental import pallas as pl
from jax.experimental.pallas import tpu as pltpu


# ----------------------------------------------------------------------------
# Fused kernel: projections + chunked causal attention + output projection
# ----------------------------------------------------------------------------
def _fused_mha_kernel(q_ref, k_ref, v_ref,
                      wq_ref, bq_ref, wk_ref, bk_ref, wv_ref, bv_ref,
                      wo_ref, bo_ref, o_ref,
                      *, h, qd, vd, chunk_size, chunks_per_block, batched_chunks):
    xq = q_ref[0]                      # (block_rows, d_model)
    xk = k_ref[0]
    xv = v_ref[0]

    # Head-fused projections (one big MXU matmul each; scale already folded
    # into wq/bq on the host).
    Q = jnp.dot(xq, wq_ref[...], preferred_element_type=jnp.float32) + bq_ref[...]
    Kp = jnp.dot(xk, wk_ref[...], preferred_element_type=jnp.float32) + bk_ref[...]
    V = jnp.dot(xv, wv_ref[...], preferred_element_type=jnp.float32) + bv_ref[...]

    # Causal mask (col > row), computed once and reused for every chunk/head.
    row = lax.broadcasted_iota(jnp.int32, (chunk_size, chunk_size), 0)
    col = lax.broadcasted_iota(jnp.int32, (chunk_size, chunk_size), 1)
    causal = col > row
    neg = jnp.float32(-1e30)           # large finite negative (robust vs -inf)

    if batched_chunks:
        # Chunk attention is block-diagonal -> fold all chunks of this block
        # into the batch dim of a single einsum per head.
        C = chunks_per_block
        Q3 = Q.reshape(C, chunk_size, h * qd)
        K3 = Kp.reshape(C, chunk_size, h * qd)
        V3 = V.reshape(C, chunk_size, h * vd)
        head_outs = []
        for hh in range(h):
            qh = Q3[:, :, hh * qd:(hh + 1) * qd]
            kh = K3[:, :, hh * qd:(hh + 1) * qd]
            vh = V3[:, :, hh * vd:(hh + 1) * vd]

            s = jnp.einsum('cik,cjk->cij', qh, kh,
                           preferred_element_type=jnp.float32)
            s = jnp.where(causal[None], neg, s)

            # softmax over last dim (one reciprocal per row instead of a
            # per-element divide)
            m = jnp.max(s, axis=-1, keepdims=True)
            e = jnp.exp(s - m)
            inv = 1.0 / jnp.sum(e, axis=-1, keepdims=True)
            p = e * inv

            head_outs.append(jnp.einsum('cij,cjd->cid', p, vh,
                                        preferred_element_type=jnp.float32))
        ctx = head_outs[0] if h == 1 else jnp.concatenate(head_outs, axis=-1)
        ctx = ctx.reshape(C * chunk_size, h * vd)
    else:
        # Fallback: statically unrolled per-chunk loop with 2-D slices only
        # (used when chunk_size is not a multiple of the sublane count).
        ctx_chunks = []
        for c in range(chunks_per_block):
            r0 = c * chunk_size
            head_outs = []
            for hh in range(h):
                qh = Q[r0:r0 + chunk_size, hh * qd:(hh + 1) * qd]
                kh = Kp[r0:r0 + chunk_size, hh * qd:(hh + 1) * qd]
                vh = V[r0:r0 + chunk_size, hh * vd:(hh + 1) * vd]

                # scores = qh @ kh^T without materializing a transpose.
                s = lax.dot_general(qh, kh, (((1,), (1,)), ((), ())),
                                    preferred_element_type=jnp.float32)
                s = jnp.where(causal, neg, s)

                m = jnp.max(s, axis=-1, keepdims=True)
                e = jnp.exp(s - m)
                inv = 1.0 / jnp.sum(e, axis=-1, keepdims=True)

                head_outs.append(jnp.dot(e * inv, vh,
                                         preferred_element_type=jnp.float32))
            ctx_chunks.append(head_outs[0] if h == 1
                              else jnp.concatenate(head_outs, axis=-1))
        ctx = ctx_chunks[0] if len(ctx_chunks) == 1 else jnp.concatenate(ctx_chunks, axis=0)

    # Output projection fused in the same kernel -> final layout, lane-dense.
    o_ref[0] = (jnp.dot(ctx, wo_ref[...], preferred_element_type=jnp.float32)
                + bo_ref[...]).astype(o_ref.dtype)


# ----------------------------------------------------------------------------
# Wrapper
# ----------------------------------------------------------------------------
def mha_chunk_forward(query, key, value, params, *, h, chunk_size,
                      target_block_rows=512):
    """Forward pass of MultiHeadAttentionChunk (the torch `mask` arg is unused)."""
    Wq, bq, Wk, bk, Wv, bv, Wo, bo = params
    B, Klen, d_model = query.shape
    assert Klen % chunk_size == 0, "K must be divisible by chunk_size"
    n_chunk = Klen // chunk_size
    qd = Wq.shape[-1] // h
    vd = Wv.shape[-1] // h

    # torch: scores / sqrt(chunk_size) then *= 1/sqrt(h).  Fold into Wq/bq so
    # the kernel does no extra per-element scaling.
    scale = (1.0 / (chunk_size ** 0.5)) * (1.0 / (h ** 0.5))
    Wq_s = (Wq * scale).astype(jnp.float32)
    bq_s = (bq * scale).reshape(1, h * qd).astype(jnp.float32)
    bk_r = bk.reshape(1, h * qd)
    bv_r = bv.reshape(1, h * vd)
    bo_r = bo.reshape(1, d_model)

    # Process several chunks per grid step (amortize per-step overhead): pick
    # the largest divisor of n_chunk whose row count fits the target block.
    max_chunks = max(1, target_block_rows // chunk_size)
    chunks_per_block = 1
    for d in range(1, n_chunk + 1):
        if n_chunk % d == 0 and d <= max_chunks:
            chunks_per_block = d
    block_rows = chunks_per_block * chunk_size
    n_blocks = n_chunk // chunks_per_block

    # Batched (3-D einsum over chunks) path only when the reshape is
    # sublane-aligned; otherwise keep the proven 2-D unrolled path.
    batched_chunks = (chunk_size % 8 == 0)

    kernel = functools.partial(_fused_mha_kernel, h=h, qd=qd, vd=vd,
                               chunk_size=chunk_size,
                               chunks_per_block=chunks_per_block,
                               batched_chunks=batched_chunks)

    # NOTE: for very large Klen/d_model tiles, raise
    # pltpu.CompilerParams(vmem_limit_bytes=...) explicitly (esp. on v7x's
    # 64 MiB VMEM).  At these block sizes the default scoped limit suffices.
    out = pl.pallas_call(
        kernel,
        out_shape=jax.ShapeDtypeStruct((B, Klen, d_model), jnp.float32),
        grid=(B, n_blocks),
        in_specs=[
            pl.BlockSpec((1, block_rows, d_model), lambda b, s: (b, s, 0)),
            pl.BlockSpec((1, block_rows, d_model), lambda b, s: (b, s, 0)),
            pl.BlockSpec((1, block_rows, d_model), lambda b, s: (b, s, 0)),
            # weights/biases: constant block index -> fetched once, stay VMEM-resident
            pl.BlockSpec((d_model, h * qd), lambda b, s: (0, 0)),
            pl.BlockSpec((1, h * qd), lambda b, s: (0, 0)),
            pl.BlockSpec((d_model, h * qd), lambda b, s: (0, 0)),
            pl.BlockSpec((1, h * qd), lambda b, s: (0, 0)),
            pl.BlockSpec((d_model, h * vd), lambda b, s: (0, 0)),
            pl.BlockSpec((1, h * vd), lambda b, s: (0, 0)),
            pl.BlockSpec((h * vd, d_model), lambda b, s: (0, 0)),
            pl.BlockSpec((1, d_model), lambda b, s: (0, 0)),
        ],
        out_specs=pl.BlockSpec((1, block_rows, d_model), lambda b, s: (b, s, 0)),
        compiler_params=pltpu.CompilerParams(
            dimension_semantics=("parallel", "parallel")),
    )(query, key, value, Wq_s, bq_s, Wk, bk_r, Wv, bv_r, Wo, bo_r)

    return out


# ----------------------------------------------------------------------------
# Pure-JAX reference (mirrors the torch chunk/cat semantics exactly)
# ----------------------------------------------------------------------------
def mha_chunk_reference(query, key, value, params, *, h, chunk_size):
    Wq, bq, Wk, bk, Wv, bv, Wo, bo = params
    B, Klen, d_model = query.shape
    n_chunk = Klen // chunk_size

    def proj_split(x, W, b):
        y = x @ W + b                                               # (B, K, h*dim)
        y = jnp.concatenate(jnp.split(y, h, axis=-1), axis=0)        # (h*B, K, dim)
        y = jnp.concatenate(jnp.split(y, n_chunk, axis=1), axis=0)   # (n_chunk*h*B, chunk, dim)
        return y

    Q = proj_split(query, Wq, bq)
    Kh = proj_split(key, Wk, bk)
    V = proj_split(value, Wv, bv)

    scores = jnp.einsum('bik,bjk->bij', Q, Kh) / jnp.sqrt(jnp.float32(chunk_size))
    scores = scores * (1.0 / (h ** 0.5))
    i = scores.shape[-1]
    causal = jnp.triu(jnp.ones((i, i), dtype=bool), k=1)
    scores = jnp.where(causal[None], -jnp.inf, scores)
    scores = jax.nn.softmax(scores, axis=-1)
    attn = jnp.einsum('bij,bjd->bid', scores, V)

    ah = jnp.concatenate(jnp.split(attn, n_chunk, axis=0), axis=1)   # (h*B, K, v)
    ah = jnp.concatenate(jnp.split(ah, h, axis=0), axis=-1)          # (B, K, h*v)
    return ah @ Wo + bo


# ----------------------------------------------------------------------------
# Main
# ----------------------------------------------------------------------------
if __name__ == "__main__":
    # Small, consistent shapes: (batch=2, K=16, d_model=32), q=v=8, h=2, chunk=8
    B, Klen, d_model = 2, 16, 32
    q_dim, v_dim, h, chunk_size = 8, 8, 2, 8

    key0 = jax.random.PRNGKey(0)
    ks = jax.random.split(key0, 12)

    # Deterministic parameter init (weights stored as (in, out), i.e. x @ W + b)
    sc = 0.1
    Wq = sc * jax.random.normal(ks[0], (d_model, q_dim * h), jnp.float32)
    bq = sc * jax.random.normal(ks[1], (q_dim * h,), jnp.float32)
    Wk = sc * jax.random.normal(ks[2], (d_model, q_dim * h), jnp.float32)
    bk = sc * jax.random.normal(ks[3], (q_dim * h,), jnp.float32)
    Wv = sc * jax.random.normal(ks[4], (d_model, v_dim * h), jnp.float32)
    bv = sc * jax.random.normal(ks[5], (v_dim * h,), jnp.float32)
    Wo = sc * jax.random.normal(ks[6], (h * v_dim, d_model), jnp.float32)
    bo = sc * jax.random.normal(ks[7], (d_model,), jnp.float32)
    params = (Wq, bq, Wk, bk, Wv, bv, Wo, bo)

    query = jax.random.normal(ks[8], (B, Klen, d_model), jnp.float32)
    key_in = jax.random.normal(ks[9], (B, Klen, d_model), jnp.float32)
    value = jax.random.normal(ks[10], (B, Klen, d_model), jnp.float32)

    # TODO(synk): attention_size (local map mask) path not implemented (module
    # default is None); attention_map (self._scores) is not materialized.
    out = mha_chunk_forward(query, key_in, value, params, h=h, chunk_size=chunk_size)
    out = jax.block_until_ready(out)

    ref = mha_chunk_reference(query, key_in, value, params, h=h, chunk_size=chunk_size)
    assert out.shape == (B, Klen, d_model)
    assert jnp.allclose(out, ref, rtol=1e-5, atol=1e-5), "mismatch vs reference"

    print("KERNEL_OK")
</pallas_src>

<mosaic_0001>
module attributes {stable_mosaic.version = 11 : i64} {
  func.func @_fused_mha_kernel(%arg0: i32, %arg1: i32, %arg2: memref<1x16x32xf32, #tpu.memory_space<vmem>>, %arg3: memref<1x16x32xf32, #tpu.memory_space<vmem>>, %arg4: memref<1x16x32xf32, #tpu.memory_space<vmem>>, %arg5: memref<32x16xf32, #tpu.memory_space<vmem>>, %arg6: memref<1x16xf32, #tpu.memory_space<vmem>>, %arg7: memref<32x16xf32, #tpu.memory_space<vmem>>, %arg8: memref<1x16xf32, #tpu.memory_space<vmem>>, %arg9: memref<32x16xf32, #tpu.memory_space<vmem>>, %arg10: memref<1x16xf32, #tpu.memory_space<vmem>>, %arg11: memref<16x32xf32, #tpu.memory_space<vmem>>, %arg12: memref<1x32xf32, #tpu.memory_space<vmem>>, %arg13: memref<1x16x32xf32, #tpu.memory_space<vmem>>) attributes {dimension_semantics = [#tpu.dimension_semantics<parallel>, #tpu.dimension_semantics<parallel>], iteration_bounds = array<i64: 2, 1>, scalar_prefetch = 0 : i64, scratch_operands = 0 : i64, tpu.core_type = #tpu.core_type<tc>, window_params = [{transform_indices = @transform_0, window_bounds = array<i64: 1, 16, 32>}, {transform_indices = @transform_1, window_bounds = array<i64: 1, 16, 32>}, {transform_indices = @transform_2, window_bounds = array<i64: 1, 16, 32>}, {pipeline_mode = #tpu.pipeline_mode<synchronous>, transform_indices = @transform_3, window_bounds = array<i64: 32, 16>}, {pipeline_mode = #tpu.pipeline_mode<synchronous>, transform_indices = @transform_4, window_bounds = array<i64: 1, 16>}, {pipeline_mode = #tpu.pipeline_mode<synchronous>, transform_indices = @transform_5, window_bounds = array<i64: 32, 16>}, {pipeline_mode = #tpu.pipeline_mode<synchronous>, transform_indices = @transform_6, window_bounds = array<i64: 1, 16>}, {pipeline_mode = #tpu.pipeline_mode<synchronous>, transform_indices = @transform_7, window_bounds = array<i64: 32, 16>}, {pipeline_mode = #tpu.pipeline_mode<synchronous>, transform_indices = @transform_8, window_bounds = array<i64: 1, 16>}, {pipeline_mode = #tpu.pipeline_mode<synchronous>, transform_indices = @transform_9, window_bounds = array<i64: 16, 32>}, {pipeline_mode = #tpu.pipeline_mode<synchronous>, transform_indices = @transform_10, window_bounds = array<i64: 1, 32>}, {transform_indices = @transform_11, window_bounds = array<i64: 1, 16, 32>}]} {
    %c0 = arith.constant 0 : index
    %c0_0 = arith.constant 0 : index
    %c0_1 = arith.constant 0 : index
    %0 = vector.load %arg2[%c0, %c0_0, %c0_1] : memref<1x16x32xf32, #tpu.memory_space<vmem>>, vector<1x16x32xf32>
    %1 = vector.shape_cast %0 : vector<1x16x32xf32> to vector<16x32xf32>
    %c0_2 = arith.constant 0 : index
    %c0_3 = arith.constant 0 : index
    %c0_4 = arith.constant 0 : index
    %2 = vector.load %arg3[%c0_2, %c0_3, %c0_4] : memref<1x16x32xf32, #tpu.memory_space<vmem>>, vector<1x16x32xf32>
    %3 = vector.shape_cast %2 : vector<1x16x32xf32> to vector<16x32xf32>
    %c0_5 = arith.constant 0 : index
    %c0_6 = arith.constant 0 : index
    %c0_7 = arith.constant 0 : index
    %4 = vector.load %arg4[%c0_5, %c0_6, %c0_7] : memref<1x16x32xf32, #tpu.memory_space<vmem>>, vector<1x16x32xf32>
    %5 = vector.shape_cast %4 : vector<1x16x32xf32> to vector<16x32xf32>
    %c0_8 = arith.constant 0 : index
    %c0_9 = arith.constant 0 : index
    %6 = vector.load %arg5[%c0_8, %c0_9] : memref<32x16xf32, #tpu.memory_space<vmem>>, vector<32x16xf32>
    %cst = arith.constant dense<0.000000e+00> : vector<16x16xf32>
    %7 = tpu.matmul %1, %6, %cst {dimension_numbers = #tpu.dot_dimension_numbers<[1], [0], [0], [1], [0, 0, 1, 1], [], []>} : vector<16x32xf32>, vector<32x16xf32>, vector<16x16xf32> -> vector<16x16xf32>
    %c0_10 = arith.constant 0 : index
    %c0_11 = arith.constant 0 : index
    %8 = vector.load %arg6[%c0_10, %c0_11] : memref<1x16xf32, #tpu.memory_space<vmem>>, vector<1x16xf32>
    %9 = vector.broadcast %8 : vector<1x16xf32> to vector<16x16xf32>
    %10 = arith.addf %7, %9 : vector<16x16xf32>
    %c0_12 = arith.constant 0 : index
    %c0_13 = arith.constant 0 : index
    %11 = vector.load %arg7[%c0_12, %c0_13] : memref<32x16xf32, #tpu.memory_space<vmem>>, vector<32x16xf32>
    %cst_14 = arith.constant dense<0.000000e+00> : vector<16x16xf32>
    %12 = tpu.matmul %3, %11, %cst_14 {dimension_numbers = #tpu.dot_dimension_numbers<[1], [0], [0], [1], [0, 0, 1, 1], [], []>} : vector<16x32xf32>, vector<32x16xf32>, vector<16x16xf32> -> vector<16x16xf32>
    %c0_15 = arith.constant 0 : index
    %c0_16 = arith.constant 0 : index
    %13 = vector.load %arg8[%c0_15, %c0_16] : memref<1x16xf32, #tpu.memory_space<vmem>>, vector<1x16xf32>
    %14 = vector.broadcast %13 : vector<1x16xf32> to vector<16x16xf32>
    %15 = arith.addf %12, %14 : vector<16x16xf32>
    %c0_17 = arith.constant 0 : index
    %c0_18 = arith.constant 0 : index
    %16 = vector.load %arg9[%c0_17, %c0_18] : memref<32x16xf32, #tpu.memory_space<vmem>>, vector<32x16xf32>
    %cst_19 = arith.constant dense<0.000000e+00> : vector<16x16xf32>
    %17 = tpu.matmul %5, %16, %cst_19 {dimension_numbers = #tpu.dot_dimension_numbers<[1], [0], [0], [1], [0, 0, 1, 1], [], []>} : vector<16x32xf32>, vector<32x16xf32>, vector<16x16xf32> -> vector<16x16xf32>
    %c0_20 = arith.constant 0 : index
    %c0_21 = arith.constant 0 : index
    %18 = vector.load %arg10[%c0_20, %c0_21] : memref<1x16xf32, #tpu.memory_space<vmem>>, vector<1x16xf32>
    %19 = vector.broadcast %18 : vector<1x16xf32> to vector<16x16xf32>
    %20 = arith.addf %17, %19 : vector<16x16xf32>
    %21 = tpu.iota {dimensions = array<i32: 0>} : vector<8x8xi32>
    %22 = tpu.iota {dimensions = array<i32: 1>} : vector<8x8xi32>
    %23 = arith.cmpi sgt, %22, %21 : vector<8x8xi32>
    %24 = vector.shape_cast %10 : vector<16x16xf32> to vector<2x8x16xf32>
    %25 = vector.shape_cast %15 : vector<16x16xf32> to vector<2x8x16xf32>
    %26 = vector.shape_cast %20 : vector<16x16xf32> to vector<2x8x16xf32>
    %27 = vector.extract_strided_slice %24 {offsets = [0, 0, 0], sizes = [2, 8, 8], strides = [1, 1, 1]} : vector<2x8x16xf32> to vector<2x8x8xf32>
    %28 = vector.extract_strided_slice %25 {offsets = [0, 0, 0], sizes = [2, 8, 8], strides = [1, 1, 1]} : vector<2x8x16xf32> to vector<2x8x8xf32>
    %29 = vector.extract_strided_slice %26 {offsets = [0, 0, 0], sizes = [2, 8, 8], strides = [1, 1, 1]} : vector<2x8x16xf32> to vector<2x8x8xf32>
    "tpu.trace_start"() <{level = 10 : i32, message = "cik,cjk->cij"}> : () -> ()
    %cst_22 = arith.constant dense<0.000000e+00> : vector<2x8x8xf32>
    %30 = tpu.matmul %27, %28, %cst_22 {dimension_numbers = #tpu.dot_dimension_numbers<[2], [2], [1], [1], [0, 0, 0, 1, 1, 1], [0], [0]>} : vector<2x8x8xf32>, vector<2x8x8xf32>, vector<2x8x8xf32> -> vector<2x8x8xf32>
    "tpu.trace_stop"() : () -> ()
    %31 = vector.shape_cast %23 : vector<8x8xi1> to vector<1x8x8xi1>
    %cst_23 = arith.constant -1.000000e+30 : f32
    %32 = vector.shape_cast %31 : vector<1x8x8xi1> to vector<1x8x8xi1>
    %33 = vector.broadcast %32 : vector<1x8x8xi1> to vector<2x8x8xi1>
    %34 = vector.broadcast %cst_23 : f32 to vector<2x8x8xf32>
    %35 = arith.select %33, %34, %30 : vector<2x8x8xi1>, vector<2x8x8xf32>
    %cst_24 = arith.constant dense<0xFF800000> : vector<2x8xf32>
    %36 = vector.multi_reduction <maximumf>, %35, %cst_24 [2] : vector<2x8x8xf32> to vector<2x8xf32>
    %37 = vector.shape_cast %36 : vector<2x8xf32> to vector<2x8x1xf32>
    %38 = vector.broadcast %37 : vector<2x8x1xf32> to vector<2x8x8xf32>
    %39 = arith.subf %35, %38 : vector<2x8x8xf32>
    %40 = math.exp %39 : vector<2x8x8xf32>
    %cst_25 = arith.constant dense<0.000000e+00> : vector<2x8xf32>
    %41 = vector.multi_reduction <add>, %40, %cst_25 [2] : vector<2x8x8xf32> to vector<2x8xf32>
    %42 = vector.shape_cast %41 : vector<2x8xf32> to vector<2x8x1xf32>
    %cst_26 = arith.constant 1.000000e+00 : f32
    %43 = vector.broadcast %cst_26 : f32 to vector<2x8x1xf32>
    %44 = arith.divf %43, %42 : vector<2x8x1xf32>
    %45 = vector.broadcast %44 : vector<2x8x1xf32> to vector<2x8x8xf32>
    %46 = arith.mulf %40, %45 : vector<2x8x8xf32>
    "tpu.trace_start"() <{level = 10 : i32, message = "cij,cjd->cid"}> : () -> ()
    %cst_27 = arith.constant dense<0.000000e+00> : vector<2x8x8xf32>
    %47 = tpu.matmul %46, %29, %cst_27 {dimension_numbers = #tpu.dot_dimension_numbers<[2], [1], [1], [2], [0, 0, 0, 1, 1, 2], [0], [0]>} : vector<2x8x8xf32>, vector<2x8x8xf32>, vector<2x8x8xf32> -> vector<2x8x8xf32>
    "tpu.trace_stop"() : () -> ()
    %48 = vector.extract_strided_slice %24 {offsets = [0, 0, 8], sizes = [2, 8, 8], strides = [1, 1, 1]} : vector<2x8x16xf32> to vector<2x8x8xf32>
    %49 = vector.extract_strided_slice %25 {offsets = [0, 0, 8], sizes = [2, 8, 8], strides = [1, 1, 1]} : vector<2x8x16xf32> to vector<2x8x8xf32>
    %50 = vector.extract_strided_slice %26 {offsets = [0, 0, 8], sizes = [2, 8, 8], strides = [1, 1, 1]} : vector<2x8x16xf32> to vector<2x8x8xf32>
    "tpu.trace_start"() <{level = 10 : i32, message = "cik,cjk->cij"}> : () -> ()
    %cst_28 = arith.constant dense<0.000000e+00> : vector<2x8x8xf32>
    %51 = tpu.matmul %48, %49, %cst_28 {dimension_numbers = #tpu.dot_dimension_numbers<[2], [2], [1], [1], [0, 0, 0, 1, 1, 1], [0], [0]>} : vector<2x8x8xf32>, vector<2x8x8xf32>, vector<2x8x8xf32> -> vector<2x8x8xf32>
    "tpu.trace_stop"() : () -> ()
    %52 = vector.shape_cast %23 : vector<8x8xi1> to vector<1x8x8xi1>
    %cst_29 = arith.constant -1.000000e+30 : f32
    %53 = vector.shape_cast %52 : vector<1x8x8xi1> to vector<1x8x8xi1>
    %54 = vector.broadcast %53 : vector<1x8x8xi1> to vector<2x8x8xi1>
    %55 = vector.broadcast %cst_29 : f32 to vector<2x8x8xf32>
    %56 = arith.select %54, %55, %51 : vector<2x8x8xi1>, vector<2x8x8xf32>
    %cst_30 = arith.constant dense<0xFF800000> : vector<2x8xf32>
    %57 = vector.multi_reduction <maximumf>, %56, %cst_30 [2] : vector<2x8x8xf32> to vector<2x8xf32>
    %58 = vector.shape_cast %57 : vector<2x8xf32> to vector<2x8x1xf32>
    %59 = vector.broadcast %58 : vector<2x8x1xf32> to vector<2x8x8xf32>
    %60 = arith.subf %56, %59 : vector<2x8x8xf32>
    %61 = math.exp %60 : vector<2x8x8xf32>
    %cst_31 = arith.constant dense<0.000000e+00> : vector<2x8xf32>
    %62 = vector.multi_reduction <add>, %61, %cst_31 [2] : vector<2x8x8xf32> to vector<2x8xf32>
    %63 = vector.shape_cast %62 : vector<2x8xf32> to vector<2x8x1xf32>
    %cst_32 = arith.constant 1.000000e+00 : f32
    %64 = vector.broadcast %cst_32 : f32 to vector<2x8x1xf32>
    %65 = arith.divf %64, %63 : vector<2x8x1xf32>
    %66 = vector.broadcast %65 : vector<2x8x1xf32> to vector<2x8x8xf32>
    %67 = arith.mulf %61, %66 : vector<2x8x8xf32>
    "tpu.trace_start"() <{level = 10 : i32, message = "cij,cjd->cid"}> : () -> ()
    %cst_33 = arith.constant dense<0.000000e+00> : vector<2x8x8xf32>
    %68 = tpu.matmul %67, %50, %cst_33 {dimension_numbers = #tpu.dot_dimension_numbers<[2], [1], [1], [2], [0, 0, 0, 1, 1, 2], [0], [0]>} : vector<2x8x8xf32>, vector<2x8x8xf32>, vector<2x8x8xf32> -> vector<2x8x8xf32>
    "tpu.trace_stop"() : () -> ()
    %69 = tpu.concatenate %47, %68 in 2 : vector<2x8x8xf32>, vector<2x8x8xf32> -> vector<2x8x16xf32>
    %70 = vector.shape_cast %69 : vector<2x8x16xf32> to vector<16x16xf32>
    %c0_34 = arith.constant 0 : index
    %c0_35 = arith.constant 0 : index
    %71 = vector.load %arg11[%c0_34, %c0_35] : memref<16x32xf32, #tpu.memory_space<vmem>>, vector<16x32xf32>
    %cst_36 = arith.constant dense<0.000000e+00> : vector<16x32xf32>
    %72 = tpu.matmul %70, %71, %cst_36 {dimension_numbers = #tpu.dot_dimension_numbers<[1], [0], [0], [1], [0, 0, 1, 1], [], []>} : vector<16x16xf32>, vector<16x32xf32>, vector<16x32xf32> -> vector<16x32xf32>
    %c0_37 = arith.constant 0 : index
    %c0_38 = arith.constant 0 : index
    %73 = vector.load %arg12[%c0_37, %c0_38] : memref<1x32xf32, #tpu.memory_space<vmem>>, vector<1x32xf32>
    %74 = vector.broadcast %73 : vector<1x32xf32> to vector<16x32xf32>
    %75 = arith.addf %72, %74 : vector<16x32xf32>
    %c0_39 = arith.constant 0 : index
    %c0_40 = arith.constant 0 : index
    %c0_41 = arith.constant 0 : index
    %76 = vector.load %arg13[%c0_39, %c0_40, %c0_41] : memref<1x16x32xf32, #tpu.memory_space<vmem>>, vector<1x16x32xf32>
    %77 = vector.shape_cast %76 : vector<1x16x32xf32> to vector<16x32xf32>
    %78 = vector.shape_cast %75 : vector<16x32xf32> to vector<1x16x32xf32>
    tpu.vector_store %arg13[%c0_39, %c0_40, %c0_41], %78 {strides = array<i32>} : memref<1x16x32xf32, #tpu.memory_space<vmem>>, vector<1x16x32xf32>,
    return
  }
  func.func @transform_0(%arg0: i32, %arg1: i32) -> (i32, i32, i32) {
    %c0_i32 = arith.constant 0 : i32
    %c0_i32_0 = arith.constant 0 : i32
    return %arg0, %arg1, %c0_i32 : i32, i32, i32
  }
  func.func @transform_1(%arg0: i32, %arg1: i32) -> (i32, i32, i32) {
    %c0_i32 = arith.constant 0 : i32
    %c0_i32_0 = arith.constant 0 : i32
    return %arg0, %arg1, %c0_i32 : i32, i32, i32
  }
  func.func @transform_2(%arg0: i32, %arg1: i32) -> (i32, i32, i32) {
    %c0_i32 = arith.constant 0 : i32
    %c0_i32_0 = arith.constant 0 : i32
    return %arg0, %arg1, %c0_i32 : i32, i32, i32
  }
  func.func @transform_3(%arg0: i32, %arg1: i32) -> (i32, i32) {
    %c0_i32 = arith.constant 0 : i32
    %c0_i32_0 = arith.constant 0 : i32
    %c0_i32_1 = arith.constant 0 : i32
    return %c0_i32, %c0_i32_0 : i32, i32
  }
  func.func @transform_4(%arg0: i32, %arg1: i32) -> (i32, i32) {
    %c0_i32 = arith.constant 0 : i32
    %c0_i32_0 = arith.constant 0 : i32
    %c0_i32_1 = arith.constant 0 : i32
    return %c0_i32, %c0_i32_0 : i32, i32
  }
  func.func @transform_5(%arg0: i32, %arg1: i32) -> (i32, i32) {
    %c0_i32 = arith.constant 0 : i32
    %c0_i32_0 = arith.constant 0 : i32
    %c0_i32_1 = arith.constant 0 : i32
    return %c0_i32, %c0_i32_0 : i32, i32
  }
  func.func @transform_6(%arg0: i32, %arg1: i32) -> (i32, i32) {
    %c0_i32 = arith.constant 0 : i32
    %c0_i32_0 = arith.constant 0 : i32
    %c0_i32_1 = arith.constant 0 : i32
    return %c0_i32, %c0_i32_0 : i32, i32
  }
  func.func @transform_7(%arg0: i32, %arg1: i32) -> (i32, i32) {
    %c0_i32 = arith.constant 0 : i32
    %c0_i32_0 = arith.constant 0 : i32
    %c0_i32_1 = arith.constant 0 : i32
    return %c0_i32, %c0_i32_0 : i32, i32
  }
  func.func @transform_8(%arg0: i32, %arg1: i32) -> (i32, i32) {
    %c0_i32 = arith.constant 0 : i32
    %c0_i32_0 = arith.constant 0 : i32
    %c0_i32_1 = arith.constant 0 : i32
    return %c0_i32, %c0_i32_0 : i32, i32
  }
  func.func @transform_9(%arg0: i32, %arg1: i32) -> (i32, i32) {
    %c0_i32 = arith.constant 0 : i32
    %c0_i32_0 = arith.constant 0 : i32
    %c0_i32_1 = arith.constant 0 : i32
    return %c0_i32, %c0_i32_0 : i32, i32
  }
  func.func @transform_10(%arg0: i32, %arg1: i32) -> (i32, i32) {
    %c0_i32 = arith.constant 0 : i32
    %c0_i32_0 = arith.constant 0 : i32
    %c0_i32_1 = arith.constant 0 : i32
    return %c0_i32, %c0_i32_0 : i32, i32
  }
  func.func @transform_11(%arg0: i32, %arg1: i32) -> (i32, i32, i32) {
    %c0_i32 = arith.constant 0 : i32
    %c0_i32_0 = arith.constant 0 : i32
    return %arg0, %arg1, %c0_i32 : i32, i32, i32
  }
}

</mosaic_0001>

<llo_original>
// kernel: tpu_custom_call.1
$region0: #{tpu_custom_call.1}
  #allocation0 [shape = 'u32[]', space=smem, size = 0x4, offset = 0x4, fixed_abs, tag = 'smem constant byte address 0x4 - core index']
  #allocation1 [shape = 'u32[72,128]{1,0:T(1,128)}', space=vmem, size = 0x9000, scoped, tag = 'internal scratch']
  %s0 = inlined_call_operand.vmem [shape: f32[2,16,32], index: 0, kind: input, shape index: {}]
  %s1 = inlined_call_operand.vmem [shape: f32[2,16,32], index: 1, kind: input, shape index: {}]
  %s2 = inlined_call_operand.vmem [shape: f32[2,16,32], index: 2, kind: input, shape index: {}]
  %s3 = inlined_call_operand.vmem [shape: f32[32,16], index: 3, kind: input, shape index: {}]
  %s4 = inlined_call_operand.vmem [shape: f32[1,16], index: 4, kind: input, shape index: {}]
  %s5 = inlined_call_operand.vmem [shape: f32[32,16], index: 5, kind: input, shape index: {}]
  %s6 = inlined_call_operand.vmem [shape: f32[1,16], index: 6, kind: input, shape index: {}]
  %s7 = inlined_call_operand.vmem [shape: f32[32,16], index: 7, kind: input, shape index: {}]
  %s8 = inlined_call_operand.vmem [shape: f32[1,16], index: 8, kind: input, shape index: {}]
  %s9 = inlined_call_operand.vmem [shape: f32[16,32], index: 9, kind: input, shape index: {}]
  %s10 = inlined_call_operand.vmem [shape: f32[1,32], index: 10, kind: input, shape index: {}]
  %s11 = inlined_call_operand.hbm [shape: f32[2,16,32], index: 11, kind: output, shape index: {}]
  %s12 = sld [smem:[#allocation0]]
  $region77: #{tpu_custom_call.1} parent=0
    _
  %s14 = ssub.s32 1, %s12
  %s15 = scalar_select 0, %s14, %s12
  $region1: #{tpu_custom_call.1} parent=0
    #allocation2 [shape = 'u8[16384]{0}', space=vmem, size = 0x4000, scoped, tag = 'output window, operand 0']
    #allocation3 [shape = 's32[2]{0}', space=sflag, size = 0x8, scoped, tag = 'scoped memory for tpu_custom_call.1']
    %16 = vsyncpa [#allocation3], 0
    %s17 = scalar_lea.sflag [#allocation3], 1
    %18 = vsyncpa %s17, 0
    loop: start=0, step=1, limit=4
    $region2: #{tpu_custom_call.1} parent=1 // loop_pre_header
      _
    $region3: #{tpu_custom_call.1} parent=1 // loop_header
      %s20 = sphi 0, %s24
      %p21 = scmp.ge.s32.totalorder %s20, 4
      %s27 = sphi 0, %s39
      %s28 = sphi 0, %s35
      %s29 = sphi 0, %s27
      %s30 = sphi 0, %s28
      %s31 = sphi 0, %s29
      %s32 = sphi 0, %s30
      %s44 = sphi 0, %s46
      %s47 = sphi 0, %s44
      %s48 = sphi 0, %s47
      %s64 = sphi 0, %s48
      %s72 = sphi 0, %s74
      %s75 = sphi 0, %s72
      %s76 = sphi 0, %s75
      %s92 = sphi 0, %s76
      %s100 = sphi 0, %s102
      %s103 = sphi 0, %s100
      %s104 = sphi 0, %s103
      %s120 = sphi 0, %s104
      %s124 = sphi 0, %s124
      %s126 = sphi 0, %s124
      %s127 = sphi 0, %s126
      %s141 = sphi 0, %s127
      %s145 = sphi 0, %s145
      %s147 = sphi 0, %s145
      %s148 = sphi 0, %s147
      %s162 = sphi 0, %s148
      %s166 = sphi 0, %s166
      %s168 = sphi 0, %s166
      %s169 = sphi 0, %s168
      %s183 = sphi 0, %s169
      %s187 = sphi 0, %s187
      %s189 = sphi 0, %s187
      %s190 = sphi 0, %s189
      %s204 = sphi 0, %s190
      %s208 = sphi 0, %s208
      %s210 = sphi 0, %s208
      %s211 = sphi 0, %s210
      %s225 = sphi 0, %s211
      %s229 = sphi 0, %s229
      %s231 = sphi 0, %s229
      %s232 = sphi 0, %s231
      %s246 = sphi 0, %s232
      %s250 = sphi 0, %s250
      %s252 = sphi 0, %s250
      %s253 = sphi 0, %s252
      %s267 = sphi 0, %s253
      %s271 = sphi 0, %s271
      %s273 = sphi 0, %s271
      %s274 = sphi 0, %s273
      %s288 = sphi 0, %s274
      %s296 = sphi 0, %s298
      %s299 = sphi 0, %s296
      %s300 = sphi 0, %s299
      %s316 = sphi 0, %s300
    $region4: #{tpu_custom_call.1} parent=1 // loop_header_branch
      %23 = sbr.rel (%p21) target = $region8
    $region5: #{tpu_custom_call.1} parent=1 // loop_body
      %s25 = ssub.s32 %s20, 1
      %s26 = ssub.s32 %s20, 2
      %s33 = sadd.s32 1, %s28
      %p34 = scmp.ge.s32.totalorder %s33, 1
      %s35 = scalar_select %p34, 0, %s33
      %s36 = sadd.s32 1, %s27
      %s37 = scalar_select %p34, %s36, %s27
      %p38 = scmp.ge.s32.totalorder %s37, 2
      %s39 = scalar_select %p38, 0, %s37
      %s40 = ssub.s32 %s27, %s39
      %s41 = ssub.s32 %s28, %s35
      %s42 = sor.u32 %s40, %s41
      %p43 = scmp.eq.s32.totalorder %s42, 0
      %s45 = sadd.s32 %s44, 1
      %s46 = scalar_select %p43, %s44, %s45
      %p49 = pneg %p43
      %p50 = scmp.eq.s32.totalorder %s20, 1
      %p51 = por %p49, %p50
      %p52 = scmp.ne.s32.totalorder %s44, %s47
      %p53 = scmp.eq.s32.totalorder %s20, 0
      %p54 = por %p52, %p53
      %p55 = scmp.ne.s32.totalorder %s44, %s47
      %p56 = scmp.eq.s32.totalorder %s25, 1
      %p57 = por %p55, %p56
      %p58 = scmp.ne.s32.totalorder %s47, %s48
      %p59 = scmp.eq.s32.totalorder %s25, 0
      %p60 = por %p58, %p59
      %p61 = scmp.ne.s32.totalorder %s47, %s48
      %p62 = scmp.eq.s32.totalorder %s26, 1
      %p63 = por %p61, %p62
      %p65 = scmp.ne.s32.totalorder %s48, %s64
      %p66 = scmp.eq.s32.totalorder %s26, 0
      %p67 = por %p65, %p66
      %s68 = ssub.s32 %s27, %s39
      %s69 = ssub.s32 %s28, %s35
      %s70 = sor.u32 %s68, %s69
      %p71 = scmp.eq.s32.totalorder %s70, 0
      %s73 = sadd.s32 %s72, 1
      %s74 = scalar_select %p71, %s72, %s73
      %p77 = pneg %p71
      %p78 = scmp.eq.s32.totalorder %s20, 1
      %p79 = por %p77, %p78
      %p80 = scmp.ne.s32.totalorder %s72, %s75
      %p81 = scmp.eq.s32.totalorder %s20, 0
      %p82 = por %p80, %p81
      %p83 = scmp.ne.s32.totalorder %s72, %s75
      %p84 = scmp.eq.s32.totalorder %s25, 1
      %p85 = por %p83, %p84
      %p86 = scmp.ne.s32.totalorder %s75, %s76
      %p87 = scmp.eq.s32.totalorder %s25, 0
      %p88 = por %p86, %p87
      %p89 = scmp.ne.s32.totalorder %s75, %s76
      %p90 = scmp.eq.s32.totalorder %s26, 1
      %p91 = por %p89, %p90
      %p93 = scmp.ne.s32.totalorder %s76, %s92
      %p94 = scmp.eq.s32.totalorder %s26, 0
      %p95 = por %p93, %p94
      %s96 = ssub.s32 %s27, %s39
      %s97 = ssub.s32 %s28, %s35
      %s98 = sor.u32 %s96, %s97
      %p99 = scmp.eq.s32.totalorder %s98, 0
      %s101 = sadd.s32 %s100, 1
      %s102 = scalar_select %p99, %s100, %s101
      %p105 = pneg %p99
      %p106 = scmp.eq.s32.totalorder %s20, 1
      %p107 = por %p105, %p106
      %p108 = scmp.ne.s32.totalorder %s100, %s103
      %p109 = scmp.eq.s32.totalorder %s20, 0
      %p110 = por %p108, %p109
      %p111 = scmp.ne.s32.totalorder %s100, %s103
      %p112 = scmp.eq.s32.totalorder %s25, 1
      %p113 = por %p111, %p112
      %p114 = scmp.ne.s32.totalorder %s103, %s104
      %p115 = scmp.eq.s32.totalorder %s25, 0
      %p116 = por %p114, %p115
      %p117 = scmp.ne.s32.totalorder %s103, %s104
      %p118 = scmp.eq.s32.totalorder %s26, 1
      %p119 = por %p117, %p118
      %p121 = scmp.ne.s32.totalorder %s104, %s120
      %p122 = scmp.eq.s32.totalorder %s26, 0
      %p123 = por %p121, %p122
      %s125 = sadd.s32 %s124, 1
      %p128 = scmp.eq.s32.totalorder %s20, 1
      %p129 = scmp.ne.s32.totalorder %s124, %s126
      %p130 = scmp.eq.s32.totalorder %s20, 0
      %p131 = por %p129, %p130
      %p132 = scmp.ne.s32.totalorder %s124, %s126
      %p133 = scmp.eq.s32.totalorder %s25, 1
      %p134 = por %p132, %p133
      %p135 = scmp.ne.s32.totalorder %s126, %s127
      %p136 = scmp.eq.s32.totalorder %s25, 0
      %p137 = por %p135, %p136
      %p138 = scmp.ne.s32.totalorder %s126, %s127
      %p139 = scmp.eq.s32.totalorder %s26, 1
      %p140 = por %p138, %p139
      %p142 = scmp.ne.s32.totalorder %s127, %s141
      %p143 = scmp.eq.s32.totalorder %s26, 0
      %p144 = por %p142, %p143
      %s146 = sadd.s32 %s145, 1
      %p149 = scmp.eq.s32.totalorder %s20, 1
      %p150 = scmp.ne.s32.totalorder %s145, %s147
      %p151 = scmp.eq.s32.totalorder %s20, 0
      %p152 = por %p150, %p151
      %p153 = scmp.ne.s32.totalorder %s145, %s147
      %p154 = scmp.eq.s32.totalorder %s25, 1
      %p155 = por %p153, %p154
      %p156 = scmp.ne.s32.totalorder %s147, %s148
      %p157 = scmp.eq.s32.totalorder %s25, 0
      %p158 = por %p156, %p157
      %p159 = scmp.ne.s32.totalorder %s147, %s148
      %p160 = scmp.eq.s32.totalorder %s26, 1
      %p161 = por %p159, %p160
      %p163 = scmp.ne.s32.totalorder %s148, %s162
      %p164 = scmp.eq.s32.totalorder %s26, 0
      %p165 = por %p163, %p164
      %s167 = sadd.s32 %s166, 1
      %p170 = scmp.eq.s32.totalorder %s20, 1
      %p171 = scmp.ne.s32.totalorder %s166, %s168
      %p172 = scmp.eq.s32.totalorder %s20, 0
      %p173 = por %p171, %p172
      %p174 = scmp.ne.s32.totalorder %s166, %s168
      %p175 = scmp.eq.s32.totalorder %s25, 1
      %p176 = por %p174, %p175
      %p177 = scmp.ne.s32.totalorder %s168, %s169
      %p178 = scmp.eq.s32.totalorder %s25, 0
      %p179 = por %p177, %p178
      %p180 = scmp.ne.s32.totalorder %s168, %s169
      %p181 = scmp.eq.s32.totalorder %s26, 1
      %p182 = por %p180, %p181
      %p184 = scmp.ne.s32.totalorder %s169, %s183
      %p185 = scmp.eq.s32.totalorder %s26, 0
      %p186 = por %p184, %p185
      %s188 = sadd.s32 %s187, 1
      %p191 = scmp.eq.s32.totalorder %s20, 1
      %p192 = scmp.ne.s32.totalorder %s187, %s189
      %p193 = scmp.eq.s32.totalorder %s20, 0
      %p194 = por %p192, %p193
      %p195 = scmp.ne.s32.totalorder %s187, %s189
      %p196 = scmp.eq.s32.totalorder %s25, 1
      %p197 = por %p195, %p196
      %p198 = scmp.ne.s32.totalorder %s189, %s190
      %p199 = scmp.eq.s32.totalorder %s25, 0
      %p200 = por %p198, %p199
      %p201 = scmp.ne.s32.totalorder %s189, %s190
      %p202 = scmp.eq.s32.totalorder %s26, 1
      %p203 = por %p201, %p202
      %p205 = scmp.ne.s32.totalorder %s190, %s204
      %p206 = scmp.eq.s32.totalorder %s26, 0
      %p207 = por %p205, %p206
      %s209 = sadd.s32 %s208, 1
      %p212 = scmp.eq.s32.totalorder %s20, 1
      %p213 = scmp.ne.s32.totalorder %s208, %s210
      %p214 = scmp.eq.s32.totalorder %s20, 0
      %p215 = por %p213, %p214
      %p216 = scmp.ne.s32.totalorder %s208, %s210
      %p217 = scmp.eq.s32.totalorder %s25, 1
      %p218 = por %p216, %p217
      %p219 = scmp.ne.s32.totalorder %s210, %s211
      %p220 = scmp.eq.s32.totalorder %s25, 0
      %p221 = por %p219, %p220
      %p222 = scmp.ne.s32.totalorder %s210, %s211
      %p223 = scmp.eq.s32.totalorder %s26, 1
      %p224 = por %p222, %p223
      %p226 = scmp.ne.s32.totalorder %s211, %s225
      %p227 = scmp.eq.s32.totalorder %s26, 0
      %p228 = por %p226, %p227
      %s230 = sadd.s32 %s229, 1
      %p233 = scmp.eq.s32.totalorder %s20, 1
      %p234 = scmp.ne.s32.totalorder %s229, %s231
      %p235 = scmp.eq.s32.totalorder %s20, 0
      %p236 = por %p234, %p235
      %p237 = scmp.ne.s32.totalorder %s229, %s231
      %p238 = scmp.eq.s32.totalorder %s25, 1
      %p239 = por %p237, %p238
      %p240 = scmp.ne.s32.totalorder %s231, %s232
      %p241 = scmp.eq.s32.totalorder %s25, 0
      %p242 = por %p240, %p241
      %p243 = scmp.ne.s32.totalorder %s231, %s232
      %p244 = scmp.eq.s32.totalorder %s26, 1
      %p245 = por %p243, %p244
      %p247 = scmp.ne.s32.totalorder %s232, %s246
      %p248 = scmp.eq.s32.totalorder %s26, 0
      %p249 = por %p247, %p248
      %s251 = sadd.s32 %s250, 1
      %p254 = scmp.eq.s32.totalorder %s20, 1
      %p255 = scmp.ne.s32.totalorder %s250, %s252
      %p256 = scmp.eq.s32.totalorder %s20, 0
      %p257 = por %p255, %p256
      %p258 = scmp.ne.s32.totalorder %s250, %s252
      %p259 = scmp.eq.s32.totalorder %s25, 1
      %p260 = por %p258, %p259
      %p261 = scmp.ne.s32.totalorder %s252, %s253
      %p262 = scmp.eq.s32.totalorder %s25, 0
      %p263 = por %p261, %p262
      %p264 = scmp.ne.s32.totalorder %s252, %s253
      %p265 = scmp.eq.s32.totalorder %s26, 1
      %p266 = por %p264, %p265
      %p268 = scmp.ne.s32.totalorder %s253, %s267
      %p269 = scmp.eq.s32.totalorder %s26, 0
      %p270 = por %p268, %p269
      %s272 = sadd.s32 %s271, 1
      %p275 = scmp.eq.s32.totalorder %s20, 1
      %p276 = scmp.ne.s32.totalorder %s271, %s273
      %p277 = scmp.eq.s32.totalorder %s20, 0
      %p278 = por %p276, %p277
      %p279 = scmp.ne.s32.totalorder %s271, %s273
      %p280 = scmp.eq.s32.totalorder %s25, 1
      %p281 = por %p279, %p280
      %p282 = scmp.ne.s32.totalorder %s273, %s274
      %p283 = scmp.eq.s32.totalorder %s25, 0
      %p284 = por %p282, %p283
      %p285 = scmp.ne.s32.totalorder %s273, %s274
      %p286 = scmp.eq.s32.totalorder %s26, 1
      %p287 = por %p285, %p286
      %p289 = scmp.ne.s32.totalorder %s274, %s288
      %p290 = scmp.eq.s32.totalorder %s26, 0
      %p291 = por %p289, %p290
      %s292 = ssub.s32 %s27, %s39
      %s293 = ssub.s32 %s28, %s35
      %s294 = sor.u32 %s292, %s293
      %p295 = scmp.eq.s32.totalorder %s294, 0
      %s297 = sadd.s32 %s296, 1
      %s298 = scalar_select %p295, %s296, %s297
      %p301 = pneg %p295
      %p302 = scmp.eq.s32.totalorder %s20, 1
      %p303 = por %p301, %p302
      %p304 = scmp.ne.s32.totalorder %s296, %s299
      %p305 = scmp.eq.s32.totalorder %s20, 0
      %p306 = por %p304, %p305
      %p307 = scmp.ne.s32.totalorder %s296, %s299
      %p308 = scmp.eq.s32.totalorder %s25, 1
      %p309 = por %p307, %p308
      %p310 = scmp.ne.s32.totalorder %s299, %s300
      %p311 = scmp.eq.s32.totalorder %s25, 0
      %p312 = por %p310, %p311
      %p313 = scmp.ne.s32.totalorder %s299, %s300
      %p314 = scmp.eq.s32.totalorder %s26, 1
      %p315 = por %p313, %p314
      %p317 = scmp.ne.s32.totalorder %s300, %s316
      %p318 = scmp.eq.s32.totalorder %s26, 0
      %p319 = por %p317, %p318
      %p320 = scmp.le.s32.totalorder 1, %s20
      %p321 = scmp.lt.s32.totalorder %s20, 3
      %p322 = pnand %p320, %p321
      %p323 = pneg %p322
      // Predicated region
      $region9: #{tpu_custom_call.1} parent=5 // pred_check
        _
      $region10: #{tpu_custom_call.1} parent=5 // pred_check_branch
        %325 = sbr.rel (%p322) target = $region12
      $region11: #{tpu_custom_call.1} parent=5 // pred_region
        %s326 = ssub.s32 %s20, 1
        // Predicated region
        $region13: #{tpu_custom_call.1} parent=11 // pred_check
          %p327 = pneg %p137
        $region14: #{tpu_custom_call.1} parent=11 // pred_check_branch
          %329 = sbr.rel (%p327) target = $region16
        $region15: #{tpu_custom_call.1} parent=11 // pred_region
          _
        $region16: #{tpu_custom_call.1} parent=11 // pred_fallthru
          _
        // Predicated region
        $region17: #{tpu_custom_call.1} parent=11 // pred_check
          %p330 = pneg %p158
        $region18: #{tpu_custom_call.1} parent=11 // pred_check_branch
          %332 = sbr.rel (%p330) target = $region20
        $region19: #{tpu_custom_call.1} parent=11 // pred_region
          _
        $region20: #{tpu_custom_call.1} parent=11 // pred_fallthru
          _
        // Predicated region
        $region21: #{tpu_custom_call.1} parent=11 // pred_check
          %p333 = pneg %p179
        $region22: #{tpu_custom_call.1} parent=11 // pred_check_branch
          %335 = sbr.rel (%p333) target = $region24
        $region23: #{tpu_custom_call.1} parent=11 // pred_region
          _
        $region24: #{tpu_custom_call.1} parent=11 // pred_fallthru
          _
        // Predicated region
        $region25: #{tpu_custom_call.1} parent=11 // pred_check
          %p336 = pneg %p200
        $region26: #{tpu_custom_call.1} parent=11 // pred_check_branch
          %338 = sbr.rel (%p336) target = $region28
        $region27: #{tpu_custom_call.1} parent=11 // pred_region
          _
        $region28: #{tpu_custom_call.1} parent=11 // pred_fallthru
          _
        // Predicated region
        $region29: #{tpu_custom_call.1} parent=11 // pred_check
          %p339 = pneg %p221
        $region30: #{tpu_custom_call.1} parent=11 // pred_check_branch
          %341 = sbr.rel (%p339) target = $region32
        $region31: #{tpu_custom_call.1} parent=11 // pred_region
          _
        $region32: #{tpu_custom_call.1} parent=11 // pred_fallthru
          _
        // Predicated region
        $region33: #{tpu_custom_call.1} parent=11 // pred_check
          %p342 = pneg %p242
        $region34: #{tpu_custom_call.1} parent=11 // pred_check_branch
          %344 = sbr.rel (%p342) target = $region36
        $region35: #{tpu_custom_call.1} parent=11 // pred_region
          _
        $region36: #{tpu_custom_call.1} parent=11 // pred_fallthru
          _
        // Predicated region
        $region37: #{tpu_custom_call.1} parent=11 // pred_check
          %p345 = pneg %p263
        $region38: #{tpu_custom_call.1} parent=11 // pred_check_branch
          %347 = sbr.rel (%p345) target = $region40
        $region39: #{tpu_custom_call.1} parent=11 // pred_region
          _
        $region40: #{tpu_custom_call.1} parent=11 // pred_fallthru
          _
        // Predicated region
        $region41: #{tpu_custom_call.1} parent=11 // pred_check
          %p348 = pneg %p284
        $region42: #{tpu_custom_call.1} parent=11 // pred_check_branch
          %350 = sbr.rel (%p348) target = $region44
        $region43: #{tpu_custom_call.1} parent=11 // pred_region
          _
        $region44: #{tpu_custom_call.1} parent=11 // pred_fallthru
          _
      $region12: #{tpu_custom_call.1} parent=5 // pred_fallthru
        _
      %p351 = scmp.lt.s32.totalorder %s20, 2
      // Predicated region
      $region45: #{tpu_custom_call.1} parent=5 // pred_check
        %p352 = pneg %p351
      $region46: #{tpu_custom_call.1} parent=5 // pred_check_branch
        %354 = sbr.rel (%p352) target = $region48
      $region47: #{tpu_custom_call.1} parent=5 // pred_region
        // Predicated region
        $region49: #{tpu_custom_call.1} parent=47 // pred_check
          %p355 = pneg %p54
        $region50: #{tpu_custom_call.1} parent=47 // pred_check_branch
          %357 = sbr.rel (%p355) target = $region52
        $region51: #{tpu_custom_call.1} parent=47 // pred_region
          %s358 = smul.u32 2, %s28
          %p359 = scmp.lt.s32.totalorder %s27, 1
          %s360 = scalar_select %p359, %s27, 1
          %p361 = scmp.lt.s32.totalorder %s358, 1
          %s362 = scalar_select %p361, %s358, 1
          %s363 = smul.addr %s360, 2
          %s364 = sadd.s32 %s362, %s363
          %s365 = smul.addr %s364, 8
          %s366 = scalar_lea.vmem %s0, %s365
          %s367 = smul.u32 2, %s28
        $region52: #{tpu_custom_call.1} parent=47 // pred_fallthru
          _
        // Predicated region
        $region53: #{tpu_custom_call.1} parent=47 // pred_check
          %p368 = pneg %p82
        $region54: #{tpu_custom_call.1} parent=47 // pred_check_branch
          %370 = sbr.rel (%p368) target = $region56
        $region55: #{tpu_custom_call.1} parent=47 // pred_region
          %s371 = smul.u32 2, %s28
          %p372 = scmp.lt.s32.totalorder %s27, 1
          %s373 = scalar_select %p372, %s27, 1
          %p374 = scmp.lt.s32.totalorder %s371, 1
          %s375 = scalar_select %p374, %s371, 1
          %s376 = smul.addr %s373, 2
          %s377 = sadd.s32 %s375, %s376
          %s378 = smul.addr %s377, 8
          %s379 = scalar_lea.vmem %s1, %s378
          %s380 = smul.u32 2, %s28
        $region56: #{tpu_custom_call.1} parent=47 // pred_fallthru
          _
        // Predicated region
        $region57: #{tpu_custom_call.1} parent=47 // pred_check
          %p381 = pneg %p110
        $region58: #{tpu_custom_call.1} parent=47 // pred_check_branch
          %383 = sbr.rel (%p381) target = $region60
        $region59: #{tpu_custom_call.1} parent=47 // pred_region
          %s384 = smul.u32 2, %s28
          %p385 = scmp.lt.s32.totalorder %s27, 1
          %s386 = scalar_select %p385, %s27, 1
          %p387 = scmp.lt.s32.totalorder %s384, 1
          %s388 = scalar_select %p387, %s384, 1
          %s389 = smul.addr %s386, 2
          %s390 = sadd.s32 %s388, %s389
          %s391 = smul.addr %s390, 8
          %s392 = scalar_lea.vmem %s2, %s391
          %s393 = smul.u32 2, %s28
        $region60: #{tpu_custom_call.1} parent=47 // pred_fallthru
          _
      $region48: #{tpu_custom_call.1} parent=5 // pred_fallthru
        _
      %p394 = scmp.le.s32.totalorder 1, %s20
      %p395 = scmp.lt.s32.totalorder %s20, 3
      %p396 = pnand %p394, %p395
      %p397 = pneg %p396
      // Predicated region
      $region61: #{tpu_custom_call.1} parent=5 // pred_check
        _
      $region62: #{tpu_custom_call.1} parent=5 // pred_check_branch
        %399 = sbr.rel (%p396) target = $region64
      $region63: #{tpu_custom_call.1} parent=5 // pred_region
        %s400 = ssub.s32 %s20, 1
        %s401 = smul.u32 2, %s30
        %p402 = scmp.lt.s32.totalorder %s29, 1
        %s403 = scalar_select %p402, %s29, 1
        %p404 = scmp.lt.s32.totalorder %s401, 1
        %s405 = scalar_select %p404, %s401, 1
        %s406 = smul.addr %s403, 2
        %s407 = sadd.s32 %s405, %s406
        %s408 = smul.addr %s407, 8
        %s409 = scalar_lea.vmem %s0, %s408
        %p410 = pneg %p60
        %p411 = pneg %p57
        %s412 = smul.u32 2, %s30
        %p413 = scmp.lt.s32.totalorder %s29, 1
        %s414 = scalar_select %p413, %s29, 1
        %p415 = scmp.lt.s32.totalorder %s412, 1
        %s416 = scalar_select %p415, %s412, 1
        %s417 = smul.addr %s414, 2
        %s418 = sadd.s32 %s416, %s417
        %s419 = smul.addr %s418, 8
        %s420 = scalar_lea.vmem %s1, %s419
        %p421 = pneg %p88
        %p422 = pneg %p85
        %s423 = smul.u32 2, %s30
        %p424 = scmp.lt.s32.totalorder %s29, 1
        %s425 = scalar_select %p424, %s29, 1
        %p426 = scmp.lt.s32.totalorder %s423, 1
        %s427 = scalar_select %p426, %s423, 1
        %s428 = smul.addr %s425, 2
        %s429 = sadd.s32 %s427, %s428
        %s430 = smul.addr %s429, 8
        %s431 = scalar_lea.vmem %s2, %s430
        %p432 = pneg %p116
        %p433 = pneg %p113
        %p434 = pneg %p137
        %p435 = pneg %p134
        %p436 = pneg %p158
        %p437 = pneg %p155
        %p438 = pneg %p179
        %p439 = pneg %p176
        %p440 = pneg %p200
        %p441 = pneg %p197
        %p442 = pneg %p221
        %p443 = pneg %p218
        %p444 = pneg %p242
        %p445 = pneg %p239
        %p446 = pneg %p263
        %p447 = pneg %p260
        %p448 = pneg %p284
        %p449 = pneg %p281
        %p450 = pneg %p312
        %p451 = pneg %p309
        %s452 = sand.u32 %s299, 1
        %s453 = scalar_lea.sflag [#allocation3], %s452
        %s454 = sand.u32 %s299, 1
        %s455 = smul.addr %s454, 16
        %s456 = scalar_lea.vmem [#allocation2], %s455
        %s457 = smul.u32 2, %s30
        %p458 = scmp.lt.s32.totalorder %s29, 1
        %s459 = scalar_select %p458, %s29, 1
        %p460 = scmp.lt.s32.totalorder %s457, 1
        %s461 = scalar_select %p460, %s457, 1
        %s462 = smul.addr %s459, 2
        %s463 = sadd.s32 %s461, %s462
        %s464 = smul.addr %s463, 8
        %s465 = scalar_lea.vmem %s0, %s464
        %s466 = smul.u32 2, %s30
        %s467 = smul.u32 2, %s30
        %p468 = scmp.lt.s32.totalorder %s29, 1
        %s469 = scalar_select %p468, %s29, 1
        %p470 = scmp.lt.s32.totalorder %s467, 1
        %s471 = scalar_select %p470, %s467, 1
        %s472 = smul.addr %s469, 2
        %s473 = sadd.s32 %s471, %s472
        %s474 = smul.addr %s473, 8
        %s475 = scalar_lea.vmem %s1, %s474
        %s476 = smul.u32 2, %s30
        %s477 = smul.u32 2, %s30
        %p478 = scmp.lt.s32.totalorder %s29, 1
        %s479 = scalar_select %p478, %s29, 1
        %p480 = scmp.lt.s32.totalorder %s477, 1
        %s481 = scalar_select %p480, %s477, 1
        %s482 = smul.addr %s479, 2
        %s483 = sadd.s32 %s481, %s482
        %s484 = smul.addr %s483, 8
        %s485 = scalar_lea.vmem %s2, %s484
        %s486 = smul.u32 2, %s30
        %s487 = smul.u32 2, %s30
        %v488 = vld [vmem:[%s465] sm:$0xff]
        %v489 = vld [vmem:[%s465 + $0x8] sm:$0xff]
        %v490 = vld [vmem:[%s475] sm:$0xff]
        %v491 = vld [vmem:[%s475 + $0x8] sm:$0xff]
        %v492 = vld [vmem:[%s485] sm:$0xff]
        %v493 = vld [vmem:[%s485 + $0x8] sm:$0xff]
        %v494 = vld [vmem:[%s3] sm:$0xff]
        %v495 = vld [vmem:[%s3 + $0x8] sm:$0xff]
        %v496 = vld [vmem:[%s3 + $0x10] sm:$0xff]
        %v497 = vld [vmem:[%s3 + $0x18] sm:$0xff]
        %v498 = vld [vmem:[%s4] sm:$0x1]
        %v500 = vperm.slane %v498, 0
        %vm502 = vcmask 261120
        %v504 = vsel %vm502, %v488, 0
        %v507 = vsel %vm502, %v489, 0
        %509 = vmatpush.msra.mxu0 0.0
        %510 = vmatpush.msra.mxu0 0.0
        %511 = vmatpush.msra.mxu0 0.0
        %512 = vmatpush.msra.mxu0 0.0
        %513 = vmatpush.msra.mxu0 0.0
        %514 = vmatpush.msra.mxu0 0.0
        %515 = vmatpush.msra.mxu0 0.0
        %516 = vmatpush.msra.mxu0 0.0
        %517 = vmatpush.msra.mxu0 0.0
        %518 = vmatpush.msra.mxu0 0.0
        %519 = vmatpush.msra.mxu0 0.0
        %520 = vmatpush.msra.mxu0 0.0
        %521 = vmatpush.msra.mxu0 %v497
        %522 = vmatpush.msra.mxu0 %v496
        %523 = vmatpush.msra.mxu0 %v495
        %524 = vmatpush.msra.mxu0 %v494
        %525 = vmatmul.f32.gmra.mxu0 %v504
        %v526 = vpop.f32.mrf.mxu0
        %v527 = vadd.f32 %v500, %v526
        %528 = vmatmul.f32.gmra.mxu0 %v507
        %v529 = vpop.f32.mrf.mxu0
        %v530 = vadd.f32 %v500, %v529
        %531 = vdwg.mxu0
        %v532 = vld [vmem:[%s5] sm:$0xff]
        %v533 = vld [vmem:[%s5 + $0x8] sm:$0xff]
        %v534 = vld [vmem:[%s5 + $0x10] sm:$0xff]
        %v535 = vld [vmem:[%s5 + $0x18] sm:$0xff]
        %v536 = vld [vmem:[%s6] sm:$0x1]
        %v538 = vperm.slane %v536, 0
        %v541 = vsel %vm502, %v490, 0
        %v544 = vsel %vm502, %v491, 0
        %546 = vmatpush.msra.mxu0 0.0
        %547 = vmatpush.msra.mxu0 0.0
        %548 = vmatpush.msra.mxu0 0.0
        %549 = vmatpush.msra.mxu0 0.0
        %550 = vmatpush.msra.mxu0 0.0
        %551 = vmatpush.msra.mxu0 0.0
        %552 = vmatpush.msra.mxu0 0.0
        %553 = vmatpush.msra.mxu0 0.0
        %554 = vmatpush.msra.mxu0 0.0
        %555 = vmatpush.msra.mxu0 0.0
        %556 = vmatpush.msra.mxu0 0.0
        %557 = vmatpush.msra.mxu0 0.0
        %558 = vmatpush.msra.mxu0 %v535
        %559 = vmatpush.msra.mxu0 %v534
        %560 = vmatpush.msra.mxu0 %v533
        %561 = vmatpush.msra.mxu0 %v532
        %562 = vmatmul.f32.gmra.mxu0 %v541
        %v563 = vpop.f32.mrf.mxu0
        %v564 = vadd.f32 %v538, %v563
        %565 = vmatmul.f32.gmra.mxu0 %v544
        %v566 = vpop.f32.mrf.mxu0
        %v567 = vadd.f32 %v538, %v566
        %568 = vdwg.mxu0
        %v569 = vld [vmem:[%s7] sm:$0xff]
        %v570 = vld [vmem:[%s7 + $0x8] sm:$0xff]
        %v571 = vld [vmem:[%s7 + $0x10] sm:$0xff]
        %v572 = vld [vmem:[%s7 + $0x18] sm:$0xff]
        %v573 = vld [vmem:[%s8] sm:$0x1]
        %v575 = vperm.slane %v573, 0
        %v578 = vsel %vm502, %v492, 0
        %v581 = vsel %vm502, %v493, 0
        %583 = vmatpush.msra.mxu0 0.0
        %584 = vmatpush.msra.mxu0 0.0
        %585 = vmatpush.msra.mxu0 0.0
        %586 = vmatpush.msra.mxu0 0.0
        %587 = vmatpush.msra.mxu0 0.0
        %588 = vmatpush.msra.mxu0 0.0
        %589 = vmatpush.msra.mxu0 0.0
        %590 = vmatpush.msra.mxu0 0.0
        %591 = vmatpush.msra.mxu0 0.0
        %592 = vmatpush.msra.mxu0 0.0
        %593 = vmatpush.msra.mxu0 0.0
        %594 = vmatpush.msra.mxu0 0.0
        %595 = vmatpush.msra.mxu0 %v572
        %596 = vmatpush.msra.mxu0 %v571
        %597 = vmatpush.msra.mxu0 %v570
        %598 = vmatpush.msra.mxu0 %v569
        %599 = vmatmul.f32.gmra.mxu0 %v578
        %v600 = vpop.f32.mrf.mxu0
        %v601 = vadd.f32 %v575, %v600
        %602 = vmatmul.f32.gmra.mxu0 %v581
        %v603 = vpop.f32.mrf.mxu0
        %v604 = vadd.f32 %v575, %v603
        %605 = vdwg.mxu0
        %v606 = vlaneseq
        %v607 = vshrl.u32 %v606, 7
        %v608 = vlaneseq
        %v609 = vand.u32 %v608, 127
        %vm610 = vcmp.gt.s32.totalorder %v609, %v607
        %vm611 = vcmask 64512
        %v613 = vsel %vm611, %v527, 0
        %v616 = vsel %vm611, %v564, 0
        %618 = vmatpush.xpose.msra.mxu0 0.0
        %619 = vmatpush.xpose.msra.mxu0 0.0
        %620 = vmatpush.xpose.msra.mxu0 0.0
        %621 = vmatpush.xpose.msra.mxu0 0.0
        %622 = vmatpush.xpose.msra.mxu0 0.0
        %623 = vmatpush.xpose.msra.mxu0 0.0
        %624 = vmatpush.xpose.msra.mxu0 0.0
        %625 = vmatpush.xpose.msra.mxu0 0.0
        %626 = vmatpush.xpose.msra.mxu0 0.0
        %627 = vmatpush.xpose.msra.mxu0 0.0
        %628 = vmatpush.xpose.msra.mxu0 0.0
        %629 = vmatpush.xpose.msra.mxu0 0.0
        %630 = vmatpush.xpose.msra.mxu0 0.0
        %631 = vmatpush.xpose.msra.mxu0 0.0
        %632 = vmatpush.xpose.msra.mxu0 0.0
        %633 = vmatpush.xpose.msra.mxu0 %v616
        %634 = vmatmul.f32.gmra.mxu0 %v613
        %v635 = vpop.f32.mrf.mxu0
        %v636 = vadd.f32 0.0, %v635
        %637 = vdwg.mxu0
        %v639 = vsel %vm611, %v530, 0
        %v642 = vsel %vm611, %v567, 0
        %644 = vmatpush.xpose.msra.mxu0 0.0
        %645 = vmatpush.xpose.msra.mxu0 0.0
        %646 = vmatpush.xpose.msra.mxu0 0.0
        %647 = vmatpush.xpose.msra.mxu0 0.0
        %648 = vmatpush.xpose.msra.mxu0 0.0
        %649 = vmatpush.xpose.msra.mxu0 0.0
        %650 = vmatpush.xpose.msra.mxu0 0.0
        %651 = vmatpush.xpose.msra.mxu0 0.0
        %652 = vmatpush.xpose.msra.mxu0 0.0
        %653 = vmatpush.xpose.msra.mxu0 0.0
        %654 = vmatpush.xpose.msra.mxu0 0.0
        %655 = vmatpush.xpose.msra.mxu0 0.0
        %656 = vmatpush.xpose.msra.mxu0 0.0
        %657 = vmatpush.xpose.msra.mxu0 0.0
        %658 = vmatpush.xpose.msra.mxu0 0.0
        %659 = vmatpush.xpose.msra.mxu0 %v642
        %660 = vmatmul.f32.gmra.mxu0 %v639
        %v661 = vpop.f32.mrf.mxu0
        %v662 = vadd.f32 0.0, %v661
        %663 = vdwg.mxu0
        %v664 = vsel %vm610, 1, 0
        %vm665 = vcmp.eq.s32.totalorder %v664, 1
        %v666 = vsel %vm665, -1e+30, %v636
        %v667 = vsel %vm665, -1e+30, %v662
        %v668 = vsel %vm611, %v666, -inf
        %669 = vmax.xlane.f32.xlu0 %v668
        %v670 = vpop.xlane.xlu0 %669
        %v671 = vsel %vm611, %v667, -inf
        %672 = vmax.xlane.f32.xlu0 %v671
        %v673 = vpop.xlane.xlu0 %672
        %v674 = vsub.f32 %v666, %v670
        %v675 = vsub.f32 %v667, %v673
        %v676 = vmul.f32 %v674, 1.442695
        %v677 = vpow.pop %v676
        %v678 = vmul.f32 %v675, 1.442695
        %v679 = vpow.pop %v678
        %v680 = vsel %vm611, %v677, 0.0
        %681 = vadd.xlane.f32.xlu0 %v680
        %v682 = vpop.xlane.xlu0 %681
        %v683 = vsel %vm611, %v679, 0.0
        %684 = vadd.xlane.f32.xlu0 %v683
        %v685 = vpop.xlane.xlu0 %684
        %v686 = vrcp.pop %v682
        %v687 = vmul.f32 %v682, %v686
        %v688 = vsub.f32 1.0, %v687
        %v689 = vmul.f32 %v686, %v688
        %v690 = vadd.f32 %v686, %v689
        %vm691 = vweird.f32 %v682
        %vm692 = vweird.f32 %v686
        %vm693 = vmor %vm691, %vm692
        %v694 = vsel %vm693, %v686, %v690
        %v695 = vand.u32 2147483647, %v682
        %vm696 = vcmp.eq.f32.partialorder %v695, 8.507059e+37
        %v697 = vand.u32 %v682, 2147483648
        %v698 = vor.u32 1.1754944e-38, %v697
        %v699 = vsel %vm696, %v698, %v694
        %v700 = vmul.f32 1.0, %v699
        %v701 = vrcp.pop %v685
        %v702 = vmul.f32 %v685, %v701
        %v703 = vsub.f32 1.0, %v702
        %v704 = vmul.f32 %v701, %v703
        %v705 = vadd.f32 %v701, %v704
        %vm706 = vweird.f32 %v685
        %vm707 = vweird.f32 %v701
        %vm708 = vmor %vm706, %vm707
        %v709 = vsel %vm708, %v701, %v705
        %v710 = vand.u32 2147483647, %v685
        %vm711 = vcmp.eq.f32.partialorder %v710, 8.507059e+37
        %v712 = vand.u32 %v685, 2147483648
        %v713 = vor.u32 1.1754944e-38, %v712
        %v714 = vsel %vm711, %v713, %v709
        %v715 = vmul.f32 1.0, %v714
        %v716 = vmul.f32 %v677, %v700
        %v717 = vmul.f32 %v679, %v715
        %v719 = vsel %vm611, %v716, 0
        %721 = vmatpush.msra.mxu0 0.0
        %722 = vmatpush.msra.mxu0 0.0
        %723 = vmatpush.msra.mxu0 0.0
        %724 = vmatpush.msra.mxu0 0.0
        %725 = vmatpush.msra.mxu0 0.0
        %726 = vmatpush.msra.mxu0 0.0
        %727 = vmatpush.msra.mxu0 0.0
        %728 = vmatpush.msra.mxu0 0.0
        %729 = vmatpush.msra.mxu0 0.0
        %730 = vmatpush.msra.mxu0 0.0
        %731 = vmatpush.msra.mxu0 0.0
        %732 = vmatpush.msra.mxu0 0.0
        %733 = vmatpush.msra.mxu0 0.0
        %734 = vmatpush.msra.mxu0 0.0
        %735 = vmatpush.msra.mxu0 0.0
        %736 = vmatpush.msra.mxu0 %v601
        %737 = vmatmul.f32.gmra.mxu0 %v719
        %v738 = vpop.f32.mrf.mxu0
        %v739 = vadd.f32 0.0, %v738
        %740 = vdwg.mxu0
        %v742 = vsel %vm611, %v717, 0
        %744 = vmatpush.msra.mxu0 0.0
        %745 = vmatpush.msra.mxu0 0.0
        %746 = vmatpush.msra.mxu0 0.0
        %747 = vmatpush.msra.mxu0 0.0
        %748 = vmatpush.msra.mxu0 0.0
        %749 = vmatpush.msra.mxu0 0.0
        %750 = vmatpush.msra.mxu0 0.0
        %751 = vmatpush.msra.mxu0 0.0
        %752 = vmatpush.msra.mxu0 0.0
        %753 = vmatpush.msra.mxu0 0.0
        %754 = vmatpush.msra.mxu0 0.0
        %755 = vmatpush.msra.mxu0 0.0
        %756 = vmatpush.msra.mxu0 0.0
        %757 = vmatpush.msra.mxu0 0.0
        %758 = vmatpush.msra.mxu0 0.0
        %759 = vmatpush.msra.mxu0 %v604
        %760 = vmatmul.f32.gmra.mxu0 %v742
        %v761 = vpop.f32.mrf.mxu0
        %v762 = vadd.f32 0.0, %v761
        %763 = vdwg.mxu0
        %764 = vrot.lane.b32.xlu0 %v527, 120
        %v765 = vpop.permute.xlu0 %764
        %766 = vrot.lane.b32.xlu0 %v564, 120
        %v767 = vpop.permute.xlu0 %766
        %v768 = vsel %vm611, %v765, 0
        %v770 = vsel %vm611, %v767, 0
        %772 = vmatpush.xpose.msra.mxu0 0.0
        %773 = vmatpush.xpose.msra.mxu0 0.0
        %774 = vmatpush.xpose.msra.mxu0 0.0
        %775 = vmatpush.xpose.msra.mxu0 0.0
        %776 = vmatpush.xpose.msra.mxu0 0.0
        %777 = vmatpush.xpose.msra.mxu0 0.0
        %778 = vmatpush.xpose.msra.mxu0 0.0
        %779 = vmatpush.xpose.msra.mxu0 0.0
        %780 = vmatpush.xpose.msra.mxu0 0.0
        %781 = vmatpush.xpose.msra.mxu0 0.0
        %782 = vmatpush.xpose.msra.mxu0 0.0
        %783 = vmatpush.xpose.msra.mxu0 0.0
        %784 = vmatpush.xpose.msra.mxu0 0.0
        %785 = vmatpush.xpose.msra.mxu0 0.0
        %786 = vmatpush.xpose.msra.mxu0 0.0
        %787 = vmatpush.xpose.msra.mxu0 %v770
        %788 = vmatmul.f32.gmra.mxu0 %v768
        %v789 = vpop.f32.mrf.mxu0
        %v790 = vadd.f32 0.0, %v789
        %791 = vdwg.mxu0
        %792 = vrot.lane.b32.xlu0 %v530, 120
        %v793 = vpop.permute.xlu0 %792
        %794 = vrot.lane.b32.xlu0 %v567, 120
        %v795 = vpop.permute.xlu0 %794
        %v796 = vsel %vm611, %v793, 0
        %v798 = vsel %vm611, %v795, 0
        %800 = vmatpush.xpose.msra.mxu0 0.0
        %801 = vmatpush.xpose.msra.mxu0 0.0
        %802 = vmatpush.xpose.msra.mxu0 0.0
        %803 = vmatpush.xpose.msra.mxu0 0.0
        %804 = vmatpush.xpose.msra.mxu0 0.0
        %805 = vmatpush.xpose.msra.mxu0 0.0
        %806 = vmatpush.xpose.msra.mxu0 0.0
        %807 = vmatpush.xpose.msra.mxu0 0.0
        %808 = vmatpush.xpose.msra.mxu0 0.0
        %809 = vmatpush.xpose.msra.mxu0 0.0
        %810 = vmatpush.xpose.msra.mxu0 0.0
        %811 = vmatpush.xpose.msra.mxu0 0.0
        %812 = vmatpush.xpose.msra.mxu0 0.0
        %813 = vmatpush.xpose.msra.mxu0 0.0
        %814 = vmatpush.xpose.msra.mxu0 0.0
        %815 = vmatpush.xpose.msra.mxu0 %v798
        %816 = vmatmul.f32.gmra.mxu0 %v796
        %v817 = vpop.f32.mrf.mxu0
        %v818 = vadd.f32 0.0, %v817
        %819 = vdwg.mxu0
        %v820 = vsel %vm665, -1e+30, %v790
        %v821 = vsel %vm665, -1e+30, %v818
        %v822 = vsel %vm611, %v820, -inf
        %823 = vmax.xlane.f32.xlu0 %v822
        %v824 = vpop.xlane.xlu0 %823
        %v825 = vsel %vm611, %v821, -inf
        %826 = vmax.xlane.f32.xlu0 %v825
        %v827 = vpop.xlane.xlu0 %826
        %v828 = vsub.f32 %v820, %v824
        %v829 = vsub.f32 %v821, %v827
        %v830 = vmul.f32 %v828, 1.442695
        %v831 = vpow.pop %v830
        %v832 = vmul.f32 %v829, 1.442695
        %v833 = vpow.pop %v832
        %v834 = vsel %vm611, %v831, 0.0
        %835 = vadd.xlane.f32.xlu0 %v834
        %v836 = vpop.xlane.xlu0 %835
        %v837 = vsel %vm611, %v833, 0.0
        %838 = vadd.xlane.f32.xlu0 %v837
        %v839 = vpop.xlane.xlu0 %838
        %v840 = vrcp.pop %v836
        %v841 = vmul.f32 %v836, %v840
        %v842 = vsub.f32 1.0, %v841
        %v843 = vmul.f32 %v840, %v842
        %v844 = vadd.f32 %v840, %v843
        %vm845 = vweird.f32 %v836
        %vm846 = vweird.f32 %v840
        %vm847 = vmor %vm845, %vm846
        %v848 = vsel %vm847, %v840, %v844
        %v849 = vand.u32 2147483647, %v836
        %vm850 = vcmp.eq.f32.partialorder %v849, 8.507059e+37
        %v851 = vand.u32 %v836, 2147483648
        %v852 = vor.u32 1.1754944e-38, %v851
        %v853 = vsel %vm850, %v852, %v848
        %v854 = vmul.f32 1.0, %v853
        %v855 = vrcp.pop %v839
        %v856 = vmul.f32 %v839, %v855
        %v857 = vsub.f32 1.0, %v856
        %v858 = vmul.f32 %v855, %v857
        %v859 = vadd.f32 %v855, %v858
        %vm860 = vweird.f32 %v839
        %vm861 = vweird.f32 %v855
        %vm862 = vmor %vm860, %vm861
        %v863 = vsel %vm862, %v855, %v859
        %v864 = vand.u32 2147483647, %v839
        %vm865 = vcmp.eq.f32.partialorder %v864, 8.507059e+37
        %v866 = vand.u32 %v839, 2147483648
        %v867 = vor.u32 1.1754944e-38, %v866
        %v868 = vsel %vm865, %v867, %v863
        %v869 = vmul.f32 1.0, %v868
        %v870 = vmul.f32 %v831, %v854
        %v871 = vmul.f32 %v833, %v869
        %873 = vrot.lane.b32.xlu0 %v601, 120
        %v874 = vpop.permute.xlu0 %873
        %v877 = vsel %vm611, %v870, 0
        %879 = vmatpush.msra.mxu0 0.0
        %880 = vmatpush.msra.mxu0 0.0
        %881 = vmatpush.msra.mxu0 0.0
        %882 = vmatpush.msra.mxu0 0.0
        %883 = vmatpush.msra.mxu0 0.0
        %884 = vmatpush.msra.mxu0 0.0
        %885 = vmatpush.msra.mxu0 0.0
        %886 = vmatpush.msra.mxu0 0.0
        %887 = vmatpush.msra.mxu0 0.0
        %888 = vmatpush.msra.mxu0 0.0
        %889 = vmatpush.msra.mxu0 0.0
        %890 = vmatpush.msra.mxu0 0.0
        %891 = vmatpush.msra.mxu0 0.0
        %892 = vmatpush.msra.mxu0 0.0
        %893 = vmatpush.msra.mxu0 0.0
        %894 = vmatpush.msra.mxu0 %v874
        %895 = vmatmul.f32.gmra.mxu0 %v877
        %v896 = vpop.f32.mrf.mxu0
        %v897 = vadd.f32 0.0, %v896
        %898 = vdwg.mxu0
        %900 = vrot.lane.b32.xlu0 %v604, 120
        %v901 = vpop.permute.xlu0 %900
        %v904 = vsel %vm611, %v871, 0
        %906 = vmatpush.msra.mxu0 0.0
        %907 = vmatpush.msra.mxu0 0.0
        %908 = vmatpush.msra.mxu0 0.0
        %909 = vmatpush.msra.mxu0 0.0
        %910 = vmatpush.msra.mxu0 0.0
        %911 = vmatpush.msra.mxu0 0.0
        %912 = vmatpush.msra.mxu0 0.0
        %913 = vmatpush.msra.mxu0 0.0
        %914 = vmatpush.msra.mxu0 0.0
        %915 = vmatpush.msra.mxu0 0.0
        %916 = vmatpush.msra.mxu0 0.0
        %917 = vmatpush.msra.mxu0 0.0
        %918 = vmatpush.msra.mxu0 0.0
        %919 = vmatpush.msra.mxu0 0.0
        %920 = vmatpush.msra.mxu0 0.0
        %921 = vmatpush.msra.mxu0 %v901
        %922 = vmatmul.f32.gmra.mxu0 %v904
        %v923 = vpop.f32.mrf.mxu0
        %v924 = vadd.f32 0.0, %v923
        %925 = vdwg.mxu0
        %928 = vrot.lane.b32.xlu0 %v897, 8
        %v929 = vpop.permute.xlu0 %928
        %930 = vrot.lane.b32.xlu0 %v924, 8
        %v931 = vpop.permute.xlu0 %930
        %v934 = vsel %vm611, %v739, %v929
        %v935 = vsel %vm611, %v762, %v931
        %v936 = vld [vmem:[%s9] sm:$0xff]
        %v937 = vld [vmem:[%s9 + $0x8] sm:$0xff]
        %v938 = vld [vmem:[%s10] sm:$0x1]
        %v940 = vperm.slane %v938, 0
        %vm942 = vcmask 130048
        %v944 = vsel %vm942, %v934, 0
        %v947 = vsel %vm942, %v935, 0
        %949 = vmatpush.msra.mxu0 0.0
        %950 = vmatpush.msra.mxu0 0.0
        %951 = vmatpush.msra.mxu0 0.0
        %952 = vmatpush.msra.mxu0 0.0
        %953 = vmatpush.msra.mxu0 0.0
        %954 = vmatpush.msra.mxu0 0.0
        %955 = vmatpush.msra.mxu0 0.0
        %956 = vmatpush.msra.mxu0 0.0
        %957 = vmatpush.msra.mxu0 0.0
        %958 = vmatpush.msra.mxu0 0.0
        %959 = vmatpush.msra.mxu0 0.0
        %960 = vmatpush.msra.mxu0 0.0
        %961 = vmatpush.msra.mxu0 0.0
        %962 = vmatpush.msra.mxu0 0.0
        %963 = vmatpush.msra.mxu0 %v937
        %964 = vmatpush.msra.mxu0 %v936
        %965 = vmatmul.f32.gmra.mxu0 %v944
        %v966 = vpop.f32.mrf.mxu0
        %v967 = vadd.f32 %v940, %v966
        %968 = vmatmul.f32.gmra.mxu0 %v947
        %v969 = vpop.f32.mrf.mxu0
        %v970 = vadd.f32 %v940, %v969
        %971 = vdwg.mxu0
        %972 = vst.msk [vmem:[%s456] sm:$0xff] %vm502, %v967
        %973 = vst.msk [vmem:[%s456 + $0x8] sm:$0xff] %vm502, %v970
        %s974 = sand.u32 %s299, 1
        %s975 = scalar_lea.sflag [#allocation3], %s974
        %s976 = sand.u32 %s299, 1
        %s977 = smul.addr %s976, 16
        %s978 = scalar_lea.vmem [#allocation2], %s977
        // Predicated region
        $region65: #{tpu_custom_call.1} parent=63 // pred_check
          %p979 = pneg %p309
        $region66: #{tpu_custom_call.1} parent=63 // pred_check_branch
          %981 = sbr.rel (%p979) target = $region68
        $region67: #{tpu_custom_call.1} parent=63 // pred_region
          %s982 = smul.u32 2, %s30
          %984 = vsyncadd %s975, 0
          %s985 = smul.addr %s29, 2
          %s986 = sadd.s32 %s982, %s985
          %s987 = smul.addr %s986, 8
          %s988 = scalar_lea.hbm %s11, %s987
          %s989 = sshll.u32 %s978, 4
          %s990 = int_to_ptr.vmem [resolvable:$true] %s989
          %s991 = sshll.u32 %s988, 4
          %s992 = int_to_ptr.hbm [resolvable:$true] %s991
          %997 = dma.vmem_to_hbm [thread:$0]  %s990, 256, %s992, %s975, 128, 128, 8
        $region68: #{tpu_custom_call.1} parent=63 // pred_fallthru
          _
      $region64: #{tpu_custom_call.1} parent=5 // pred_fallthru
        _
      %p998 = scmp.le.s32.totalorder 2, %s20
      // Predicated region
      $region69: #{tpu_custom_call.1} parent=5 // pred_check
        %p999 = pneg %p998
      $region70: #{tpu_custom_call.1} parent=5 // pred_check_branch
        %1001 = sbr.rel (%p999) target = $region72
      $region71: #{tpu_custom_call.1} parent=5 // pred_region
        %s1002 = ssub.s32 %s20, 2
        // Predicated region
        $region73: #{tpu_custom_call.1} parent=71 // pred_check
          %p1003 = pneg %p315
        $region74: #{tpu_custom_call.1} parent=71 // pred_check_branch
          %1005 = sbr.rel (%p1003) target = $region76
        $region75: #{tpu_custom_call.1} parent=71 // pred_region
          %s1006 = sand.u32 %s300, 1
          %s1007 = scalar_lea.sflag [#allocation3], %s1006
          %s1008 = sand.u32 %s300, 1
          %s1009 = smul.addr %s1008, 16
          %s1010 = scalar_lea.vmem [#allocation2], %s1009
          %1012 = dma.done %s1007, 256
        $region76: #{tpu_custom_call.1} parent=71 // pred_fallthru
          _
      $region72: #{tpu_custom_call.1} parent=5 // pred_fallthru
        _
    $region6: #{tpu_custom_call.1} parent=1 // loop_footer
      %s24 = sadd.s32 1, %s20
    $region7: #{tpu_custom_call.1} parent=1 // loop_footer_branch
      %19 = sbr.rel target = $region3
    $region8: #{tpu_custom_call.1} parent=1 // loop_exit
      _
    %1013 = vsyncpa [#allocation3], 1
    %s1014 = scalar_lea.sflag [#allocation3], 1
    %1015 = vsyncpa %s1014, 1

</llo_original>
